<compile_context>
chip_gen: v6e
topology: v6e:2x2x1
jax: 0.10.0
libtpu: 0.0.40
codegen_flags: <defaults>
</compile_context>

<pallas_src>
import functools
import math

import jax
import jax.numpy as jnp
from jax import lax
from jax.experimental import pallas as pl
from jax.experimental.pallas import tpu as pltpu


def _dwconv_kernel(w_ref, b_ref, x_ref, o_ref, *, K, KH, KW, S, Wh, Lo):
    """One (batch element, channel tile) grid step.

    w_ref: (KH*KW, K, Ct, 1) f32 VMEM  per-tap, per-output-channel weights (resident)
    b_ref: (K, Ct, 1)        f32 VMEM  bias (resident)
    x_ref: (1, S*S, Ct, Lpad)          stride-phase-split, flattened, zero-padded input
    o_ref: (1, K, Ct, Lo)              flattened output block (Lo = Ho*Wh)
    """
    Ct = x_ref.shape[2]
    acc = jnp.zeros((K, Ct, Lo), jnp.float32)
    # Fixed KH*KW tap loop (9 for a 3x3 kernel) -- small and fully unrolled on
    # purpose; channel scaling happens on the grid axis, not in this loop.
    for kh in range(KH):
        for kw in range(KW):
            p = (kh % S) * S + (kw % S)            # which stride-phase grid
            start = (kh // S) * Wh + (kw // S)     # flattened shift inside that grid
            # Ref-side contiguous tap load: (Ct, Lo), channels on sublanes,
            # flattened output positions on the lane axis.
            tap = x_ref[0, p, :, start:start + Lo].astype(jnp.float32)
            w_t = w_ref[kh * KW + kw]              # (K, Ct, 1) -> lane-broadcast weights
            acc = acc + w_t * tap[None, :, :]      # one wide VPU FMA per tap
    # Bias added once; single store for the whole block.
    o_ref[0] = (acc + b_ref[...]).astype(o_ref.dtype)


def _pick_channel_tile(C, S, K, Lpad, Lo, itemsize=4, budget_bytes=8 * 1024 * 1024):
    """Largest channel tile whose double-buffered in+out blocks fit the VMEM budget.

    The tile must divide C and (when smaller than C) be a multiple of 8 so the
    second-to-last block dims keep satisfying the (8, 128) tiling constraint.
    """
    per_c = 2 * itemsize * (S * S * Lpad + K * Lo)     # double-buffered input + output
    max_ct = max(1, budget_bytes // per_c)
    if C <= max_ct:
        return C
    ct = min(max_ct, C) // 8 * 8
    while ct >= 8 and C % ct != 0:
        ct -= 8
    return ct if ct >= 8 else C                        # fall back to whole C (correctness first)


def depthwise_conv2d(x, weight, bias, *, stride=2, padding=0):
    """x: (N, C, H, W); weight: (OC, 1, KH, KW) with OC = K*C; bias: (OC,)."""
    N, C, H, W = x.shape
    OC, _, KH, KW = weight.shape
    assert OC % C == 0, "out_channels must be a multiple of in_channels"
    K = OC // C
    S, P = int(stride), int(padding)

    Hp, Wp = H + 2 * P, W + 2 * P
    Ho = (Hp - KH) // S + 1
    Wo = (Wp - KW) // S + 1
    assert Ho > 0 and Wo > 0, "kernel larger than (padded) input"

    # ---- layout glue (single pass; XLA may fuse it into the kernel input DMA) ----
    # Zero-pad, split into S*S stride-phase grids and flatten each grid row-major:
    #   xflat[n, ph*S+pw, c, r*Wh + q] = xpad[n, c, r*S+ph, q*S+pw]
    pad_h = (-Hp) % S
    pad_w = (-Wp) % S
    Hh, Wh = (Hp + pad_h) // S, (Wp + pad_w) // S
    dh_max, dw_max = (KH - 1) // S, (KW - 1) // S
    Lo = Ho * Wh                                   # flattened output run (cols >= Wo are junk)
    Lpad = Hh * Wh + dh_max * Wh + dw_max          # room for the largest tap shift
    Lpad = (Lpad + 127) // 128 * 128               # lane-align the flattened axis

    xp = jnp.pad(x, ((0, 0), (0, 0), (P, P + pad_h), (P, P + pad_w)))
    xph = xp.reshape(N, C, Hh, S, Wh, S).transpose(0, 3, 5, 1, 2, 4)   # (N,S,S,C,Hh,Wh)
    xflat = xph.reshape(N, S * S, C, Hh * Wh)
    xflat = jnp.pad(xflat, ((0, 0), (0, 0), (0, 0), (0, Lpad - Hh * Wh)))

    # Weights -> (KH*KW, K, C, 1), bias -> (K, C, 1): small resident VMEM vectors.
    w_r = weight.reshape(C, K, KH * KW).transpose(2, 1, 0)[..., None].astype(jnp.float32)
    b_r = bias.reshape(C, K).transpose(1, 0)[..., None].astype(jnp.float32)

    Ct = _pick_channel_tile(C, S, K, Lpad, Lo)
    n_ct = C // Ct

    kernel = functools.partial(_dwconv_kernel, K=K, KH=KH, KW=KW, S=S, Wh=Wh, Lo=Lo)

    out_flat = pl.pallas_call(
        kernel,
        out_shape=jax.ShapeDtypeStruct((N, K, C, Lo), x.dtype),
        grid_spec=pltpu.PrefetchScalarGridSpec(
            num_scalar_prefetch=0,
            grid=(N, n_ct),
            in_specs=[
                pl.BlockSpec((KH * KW, K, Ct, 1), lambda n, j: (0, 0, j, 0)),   # weights
                pl.BlockSpec((K, Ct, 1), lambda n, j: (0, j, 0)),               # bias
                pl.BlockSpec((1, S * S, Ct, Lpad), lambda n, j: (n, 0, j, 0)),  # input
            ],
            out_specs=pl.BlockSpec((1, K, Ct, Lo), lambda n, j: (n, 0, j, 0)),
        ),
        compiler_params=pltpu.CompilerParams(
            dimension_semantics=("parallel", "parallel"),
            vmem_limit_bytes=64 * 1024 * 1024,
            allow_input_fusion=[False, False, True],
        ),
    )(w_r, b_r, xflat)

    # Undo the flattening: drop junk columns, restore PyTorch's oc = c*K + k order.
    out = out_flat.reshape(N, K, C, Ho, Wh)[..., :Wo]
    return out.transpose(0, 2, 1, 3, 4).reshape(N, OC, Ho, Wo)


def _reference(x, weight, bias, stride, padding):
    C = x.shape[1]
    return lax.conv_general_dilated(
        x, weight, window_strides=(stride, stride),
        padding=[(padding, padding), (padding, padding)],
        dimension_numbers=("NCHW", "OIHW", "NCHW"),
        feature_group_count=C,
    ) + bias[None, :, None, None]


if __name__ == "__main__":
    # Module config: in_channels=4, out_channels=8 (K=2), kernel_size=3,
    # stride=2 (module default), padding=0 (module default).
    N, C, K = 2, 4, 2
    OC = C * K
    H = W = 16
    KH = KW = 3

    key = jax.random.PRNGKey(0)
    kx, kw_key, kb_key = jax.random.split(key, 3)
    x = jax.random.normal(kx, (N, C, H, W), dtype=jnp.float32)

    # Deterministic parameter init mimicking nn.Conv2d defaults
    # (uniform with bound 1/sqrt(fan_in), fan_in = (C/groups)*KH*KW = KH*KW).
    fan_in = 1 * KH * KW
    bound = 1.0 / math.sqrt(fan_in)
    weight = jax.random.uniform(kw_key, (OC, 1, KH, KW), jnp.float32, -bound, bound)
    bias = jax.random.uniform(kb_key, (OC,), jnp.float32, -bound, bound)

    for (stride, padding) in ((2, 0), (2, 1)):
        out = depthwise_conv2d(x, weight, bias, stride=stride, padding=padding)
        out = jax.block_until_ready(out)
        ref = _reference(x, weight, bias, stride, padding)
        Ho = (H + 2 * padding - KH) // stride + 1
        Wo = (W + 2 * padding - KW) // stride + 1
        assert out.shape == (N, OC, Ho, Wo), (out.shape, (N, OC, Ho, Wo))
        assert jnp.allclose(out, ref, rtol=1e-5, atol=1e-5), \
            f"mismatch vs reference (stride={stride}, padding={padding})"
    print("KERNEL_OK")
</pallas_src>

<mosaic_0001>
module attributes {stable_mosaic.version = 11 : i64} {
  func.func @_dwconv_kernel(%arg0: i32, %arg1: i32, %arg2: memref<9x2x4x1xf32, #tpu.memory_space<vmem>>, %arg3: memref<2x4x1xf32, #tpu.memory_space<vmem>>, %arg4: memref<1x4x4x128xf32, #tpu.memory_space<vmem>>, %arg5: memref<1x2x4x56xf32, #tpu.memory_space<vmem>>) attributes {dimension_semantics = [#tpu.dimension_semantics<parallel>, #tpu.dimension_semantics<parallel>], iteration_bounds = array<i64: 2, 1>, scalar_prefetch = 0 : i64, scratch_operands = 0 : i64, tpu.core_type = #tpu.core_type<tc>, window_params = [{transform_indices = @transform_0, window_bounds = array<i64: 9, 2, 4, 1>}, {transform_indices = @transform_1, window_bounds = array<i64: 2, 4, 1>}, {transform_indices = @transform_2, window_bounds = array<i64: 1, 4, 4, 128>}, {transform_indices = @transform_3, window_bounds = array<i64: 1, 2, 4, 56>}]} {
    %cst = arith.constant 0.000000e+00 : f32
    %0 = vector.broadcast %cst : f32 to vector<2x4x56xf32>
    %c0 = arith.constant 0 : index
    %c0_0 = arith.constant 0 : index
    %c0_1 = arith.constant 0 : index
    %c0_2 = arith.constant 0 : index
    %1 = vector.load %arg4[%c0, %c0_0, %c0_1, %c0_2] : memref<1x4x4x128xf32, #tpu.memory_space<vmem>>, vector<1x1x4x56xf32>
    %2 = vector.shape_cast %1 : vector<1x1x4x56xf32> to vector<4x56xf32>
    %c0_3 = arith.constant 0 : index
    %c0_4 = arith.constant 0 : index
    %c0_5 = arith.constant 0 : index
    %c0_6 = arith.constant 0 : index
    %3 = vector.load %arg2[%c0_3, %c0_4, %c0_5, %c0_6] : memref<9x2x4x1xf32, #tpu.memory_space<vmem>>, vector<1x2x4x1xf32>
    %4 = vector.shape_cast %3 : vector<1x2x4x1xf32> to vector<2x4x1xf32>
    %5 = vector.shape_cast %2 : vector<4x56xf32> to vector<1x4x56xf32>
    %6 = vector.broadcast %4 : vector<2x4x1xf32> to vector<2x4x56xf32>
    %7 = vector.broadcast %5 : vector<1x4x56xf32> to vector<2x4x56xf32>
    %8 = arith.mulf %6, %7 : vector<2x4x56xf32>
    %9 = arith.addf %0, %8 : vector<2x4x56xf32>
    %c0_7 = arith.constant 0 : index
    %c1 = arith.constant 1 : index
    %c0_8 = arith.constant 0 : index
    %c0_9 = arith.constant 0 : index
    %10 = vector.load %arg4[%c0_7, %c1, %c0_8, %c0_9] : memref<1x4x4x128xf32, #tpu.memory_space<vmem>>, vector<1x1x4x56xf32>
    %11 = vector.shape_cast %10 : vector<1x1x4x56xf32> to vector<4x56xf32>
    %c1_10 = arith.constant 1 : index
    %c0_11 = arith.constant 0 : index
    %c0_12 = arith.constant 0 : index
    %c0_13 = arith.constant 0 : index
    %12 = vector.load %arg2[%c1_10, %c0_11, %c0_12, %c0_13] : memref<9x2x4x1xf32, #tpu.memory_space<vmem>>, vector<1x2x4x1xf32>
    %13 = vector.shape_cast %12 : vector<1x2x4x1xf32> to vector<2x4x1xf32>
    %14 = vector.shape_cast %11 : vector<4x56xf32> to vector<1x4x56xf32>
    %15 = vector.broadcast %13 : vector<2x4x1xf32> to vector<2x4x56xf32>
    %16 = vector.broadcast %14 : vector<1x4x56xf32> to vector<2x4x56xf32>
    %17 = arith.mulf %15, %16 : vector<2x4x56xf32>
    %18 = arith.addf %9, %17 : vector<2x4x56xf32>
    %c0_14 = arith.constant 0 : index
    %c0_15 = arith.constant 0 : index
    %c0_16 = arith.constant 0 : index
    %c1_17 = arith.constant 1 : index
    %19 = vector.load %arg4[%c0_14, %c0_15, %c0_16, %c1_17] : memref<1x4x4x128xf32, #tpu.memory_space<vmem>>, vector<1x1x4x56xf32>
    %20 = vector.shape_cast %19 : vector<1x1x4x56xf32> to vector<4x56xf32>
    %c2 = arith.constant 2 : index
    %c0_18 = arith.constant 0 : index
    %c0_19 = arith.constant 0 : index
    %c0_20 = arith.constant 0 : index
    %21 = vector.load %arg2[%c2, %c0_18, %c0_19, %c0_20] : memref<9x2x4x1xf32, #tpu.memory_space<vmem>>, vector<1x2x4x1xf32>
    %22 = vector.shape_cast %21 : vector<1x2x4x1xf32> to vector<2x4x1xf32>
    %23 = vector.shape_cast %20 : vector<4x56xf32> to vector<1x4x56xf32>
    %24 = vector.broadcast %22 : vector<2x4x1xf32> to vector<2x4x56xf32>
    %25 = vector.broadcast %23 : vector<1x4x56xf32> to vector<2x4x56xf32>
    %26 = arith.mulf %24, %25 : vector<2x4x56xf32>
    %27 = arith.addf %18, %26 : vector<2x4x56xf32>
    %c0_21 = arith.constant 0 : index
    %c2_22 = arith.constant 2 : index
    %c0_23 = arith.constant 0 : index
    %c0_24 = arith.constant 0 : index
    %28 = vector.load %arg4[%c0_21, %c2_22, %c0_23, %c0_24] : memref<1x4x4x128xf32, #tpu.memory_space<vmem>>, vector<1x1x4x56xf32>
    %29 = vector.shape_cast %28 : vector<1x1x4x56xf32> to vector<4x56xf32>
    %c3 = arith.constant 3 : index
    %c0_25 = arith.constant 0 : index
    %c0_26 = arith.constant 0 : index
    %c0_27 = arith.constant 0 : index
    %30 = vector.load %arg2[%c3, %c0_25, %c0_26, %c0_27] : memref<9x2x4x1xf32, #tpu.memory_space<vmem>>, vector<1x2x4x1xf32>
    %31 = vector.shape_cast %30 : vector<1x2x4x1xf32> to vector<2x4x1xf32>
    %32 = vector.shape_cast %29 : vector<4x56xf32> to vector<1x4x56xf32>
    %33 = vector.broadcast %31 : vector<2x4x1xf32> to vector<2x4x56xf32>
    %34 = vector.broadcast %32 : vector<1x4x56xf32> to vector<2x4x56xf32>
    %35 = arith.mulf %33, %34 : vector<2x4x56xf32>
    %36 = arith.addf %27, %35 : vector<2x4x56xf32>
    %c0_28 = arith.constant 0 : index
    %c3_29 = arith.constant 3 : index
    %c0_30 = arith.constant 0 : index
    %c0_31 = arith.constant 0 : index
    %37 = vector.load %arg4[%c0_28, %c3_29, %c0_30, %c0_31] : memref<1x4x4x128xf32, #tpu.memory_space<vmem>>, vector<1x1x4x56xf32>
    %38 = vector.shape_cast %37 : vector<1x1x4x56xf32> to vector<4x56xf32>
    %c4 = arith.constant 4 : index
    %c0_32 = arith.constant 0 : index
    %c0_33 = arith.constant 0 : index
    %c0_34 = arith.constant 0 : index
    %39 = vector.load %arg2[%c4, %c0_32, %c0_33, %c0_34] : memref<9x2x4x1xf32, #tpu.memory_space<vmem>>, vector<1x2x4x1xf32>
    %40 = vector.shape_cast %39 : vector<1x2x4x1xf32> to vector<2x4x1xf32>
    %41 = vector.shape_cast %38 : vector<4x56xf32> to vector<1x4x56xf32>
    %42 = vector.broadcast %40 : vector<2x4x1xf32> to vector<2x4x56xf32>
    %43 = vector.broadcast %41 : vector<1x4x56xf32> to vector<2x4x56xf32>
    %44 = arith.mulf %42, %43 : vector<2x4x56xf32>
    %45 = arith.addf %36, %44 : vector<2x4x56xf32>
    %c0_35 = arith.constant 0 : index
    %c2_36 = arith.constant 2 : index
    %c0_37 = arith.constant 0 : index
    %c1_38 = arith.constant 1 : index
    %46 = vector.load %arg4[%c0_35, %c2_36, %c0_37, %c1_38] : memref<1x4x4x128xf32, #tpu.memory_space<vmem>>, vector<1x1x4x56xf32>
    %47 = vector.shape_cast %46 : vector<1x1x4x56xf32> to vector<4x56xf32>
    %c5 = arith.constant 5 : index
    %c0_39 = arith.constant 0 : index
    %c0_40 = arith.constant 0 : index
    %c0_41 = arith.constant 0 : index
    %48 = vector.load %arg2[%c5, %c0_39, %c0_40, %c0_41] : memref<9x2x4x1xf32, #tpu.memory_space<vmem>>, vector<1x2x4x1xf32>
    %49 = vector.shape_cast %48 : vector<1x2x4x1xf32> to vector<2x4x1xf32>
    %50 = vector.shape_cast %47 : vector<4x56xf32> to vector<1x4x56xf32>
    %51 = vector.broadcast %49 : vector<2x4x1xf32> to vector<2x4x56xf32>
    %52 = vector.broadcast %50 : vector<1x4x56xf32> to vector<2x4x56xf32>
    %53 = arith.mulf %51, %52 : vector<2x4x56xf32>
    %54 = arith.addf %45, %53 : vector<2x4x56xf32>
    %c0_42 = arith.constant 0 : index
    %c0_43 = arith.constant 0 : index
    %c0_44 = arith.constant 0 : index
    %c8 = arith.constant 8 : index
    %55 = vector.load %arg4[%c0_42, %c0_43, %c0_44, %c8] : memref<1x4x4x128xf32, #tpu.memory_space<vmem>>, vector<1x1x4x56xf32>
    %56 = vector.shape_cast %55 : vector<1x1x4x56xf32> to vector<4x56xf32>
    %c6 = arith.constant 6 : index
    %c0_45 = arith.constant 0 : index
    %c0_46 = arith.constant 0 : index
    %c0_47 = arith.constant 0 : index
    %57 = vector.load %arg2[%c6, %c0_45, %c0_46, %c0_47] : memref<9x2x4x1xf32, #tpu.memory_space<vmem>>, vector<1x2x4x1xf32>
    %58 = vector.shape_cast %57 : vector<1x2x4x1xf32> to vector<2x4x1xf32>
    %59 = vector.shape_cast %56 : vector<4x56xf32> to vector<1x4x56xf32>
    %60 = vector.broadcast %58 : vector<2x4x1xf32> to vector<2x4x56xf32>
    %61 = vector.broadcast %59 : vector<1x4x56xf32> to vector<2x4x56xf32>
    %62 = arith.mulf %60, %61 : vector<2x4x56xf32>
    %63 = arith.addf %54, %62 : vector<2x4x56xf32>
    %c0_48 = arith.constant 0 : index
    %c1_49 = arith.constant 1 : index
    %c0_50 = arith.constant 0 : index
    %c8_51 = arith.constant 8 : index
    %64 = vector.load %arg4[%c0_48, %c1_49, %c0_50, %c8_51] : memref<1x4x4x128xf32, #tpu.memory_space<vmem>>, vector<1x1x4x56xf32>
    %65 = vector.shape_cast %64 : vector<1x1x4x56xf32> to vector<4x56xf32>
    %c7 = arith.constant 7 : index
    %c0_52 = arith.constant 0 : index
    %c0_53 = arith.constant 0 : index
    %c0_54 = arith.constant 0 : index
    %66 = vector.load %arg2[%c7, %c0_52, %c0_53, %c0_54] : memref<9x2x4x1xf32, #tpu.memory_space<vmem>>, vector<1x2x4x1xf32>
    %67 = vector.shape_cast %66 : vector<1x2x4x1xf32> to vector<2x4x1xf32>
    %68 = vector.shape_cast %65 : vector<4x56xf32> to vector<1x4x56xf32>
    %69 = vector.broadcast %67 : vector<2x4x1xf32> to vector<2x4x56xf32>
    %70 = vector.broadcast %68 : vector<1x4x56xf32> to vector<2x4x56xf32>
    %71 = arith.mulf %69, %70 : vector<2x4x56xf32>
    %72 = arith.addf %63, %71 : vector<2x4x56xf32>
    %c0_55 = arith.constant 0 : index
    %c0_56 = arith.constant 0 : index
    %c0_57 = arith.constant 0 : index
    %c9 = arith.constant 9 : index
    %73 = vector.load %arg4[%c0_55, %c0_56, %c0_57, %c9] : memref<1x4x4x128xf32, #tpu.memory_space<vmem>>, vector<1x1x4x56xf32>
    %74 = vector.shape_cast %73 : vector<1x1x4x56xf32> to vector<4x56xf32>
    %c8_58 = arith.constant 8 : index
    %c0_59 = arith.constant 0 : index
    %c0_60 = arith.constant 0 : index
    %c0_61 = arith.constant 0 : index
    %75 = vector.load %arg2[%c8_58, %c0_59, %c0_60, %c0_61] : memref<9x2x4x1xf32, #tpu.memory_space<vmem>>, vector<1x2x4x1xf32>
    %76 = vector.shape_cast %75 : vector<1x2x4x1xf32> to vector<2x4x1xf32>
    %77 = vector.shape_cast %74 : vector<4x56xf32> to vector<1x4x56xf32>
    %78 = vector.broadcast %76 : vector<2x4x1xf32> to vector<2x4x56xf32>
    %79 = vector.broadcast %77 : vector<1x4x56xf32> to vector<2x4x56xf32>
    %80 = arith.mulf %78, %79 : vector<2x4x56xf32>
    %81 = arith.addf %72, %80 : vector<2x4x56xf32>
    %c0_62 = arith.constant 0 : index
    %c0_63 = arith.constant 0 : index
    %c0_64 = arith.constant 0 : index
    %82 = vector.load %arg3[%c0_62, %c0_63, %c0_64] : memref<2x4x1xf32, #tpu.memory_space<vmem>>, vector<2x4x1xf32>
    %83 = vector.broadcast %82 : vector<2x4x1xf32> to vector<2x4x56xf32>
    %84 = arith.addf %81, %83 : vector<2x4x56xf32>
    %c0_65 = arith.constant 0 : index
    %c0_66 = arith.constant 0 : index
    %c0_67 = arith.constant 0 : index
    %c0_68 = arith.constant 0 : index
    %85 = vector.load %arg5[%c0_65, %c0_66, %c0_67, %c0_68] : memref<1x2x4x56xf32, #tpu.memory_space<vmem>>, vector<1x2x4x56xf32>
    %86 = vector.shape_cast %85 : vector<1x2x4x56xf32> to vector<2x4x56xf32>
    %87 = vector.shape_cast %84 : vector<2x4x56xf32> to vector<1x2x4x56xf32>
    tpu.vector_store %arg5[%c0_65, %c0_66, %c0_67, %c0_68], %87 {strides = array<i32>} : memref<1x2x4x56xf32, #tpu.memory_space<vmem>>, vector<1x2x4x56xf32>,
    return
  }
  func.func @transform_0(%arg0: i32, %arg1: i32) -> (i32, i32, i32, i32) {
    %c0_i32 = arith.constant 0 : i32
    %c0_i32_0 = arith.constant 0 : i32
    %c0_i32_1 = arith.constant 0 : i32
    %c0_i32_2 = arith.constant 0 : i32
    return %c0_i32, %c0_i32_0, %arg1, %c0_i32_1 : i32, i32, i32, i32
  }
  func.func @transform_1(%arg0: i32, %arg1: i32) -> (i32, i32, i32) {
    %c0_i32 = arith.constant 0 : i32
    %c0_i32_0 = arith.constant 0 : i32
    %c0_i32_1 = arith.constant 0 : i32
    return %c0_i32, %arg1, %c0_i32_0 : i32, i32, i32
  }
  func.func @transform_2(%arg0: i32, %arg1: i32) -> (i32, i32, i32, i32) {
    %c0_i32 = arith.constant 0 : i32
    %c0_i32_0 = arith.constant 0 : i32
    %c0_i32_1 = arith.constant 0 : i32
    return %arg0, %c0_i32, %arg1, %c0_i32_0 : i32, i32, i32, i32
  }
  func.func @transform_3(%arg0: i32, %arg1: i32) -> (i32, i32, i32, i32) {
    %c0_i32 = arith.constant 0 : i32
    %c0_i32_0 = arith.constant 0 : i32
    %c0_i32_1 = arith.constant 0 : i32
    return %arg0, %c0_i32, %arg1, %c0_i32_0 : i32, i32, i32, i32
  }
}

</mosaic_0001>

<llo_original>
// kernel: tpu_custom_call.1
$region0: #{tpu_custom_call.1}
  #allocation0 [shape = 'u32[]', space=smem, size = 0x4, offset = 0x4, fixed_abs, tag = 'smem constant byte address 0x4 - core index']
  #allocation1 [shape = 'u32[144,128]{1,0:T(1,128)}', space=vmem, size = 0x12000, scoped, tag = 'internal scratch']
  %s0 = inlined_call_operand.vmem [shape: f32[9,2,4,1], index: 0, kind: input, shape index: {}]
  %s1 = inlined_call_operand.vmem [shape: f32[2,4,1], index: 1, kind: input, shape index: {}]
  %s2 = inlined_call_operand.vmem [shape: f32[2,4,4,128], index: 2, kind: input, shape index: {}]
  %s3 = inlined_call_operand.hbm [shape: f32[2,2,4,56], index: 3, kind: output, shape index: {}]
  %s4 = sld [smem:[#allocation0]]
  $region45: #{tpu_custom_call.1} parent=0
    _
  %s6 = ssub.s32 1, %s4
  %s7 = scalar_select 0, %s6, %s4
  $region1: #{tpu_custom_call.1} parent=0
    #allocation2 [shape = 'u8[8192]{0}', space=vmem, size = 0x2000, scoped, tag = 'output window, operand 0']
    #allocation3 [shape = 's32[2]{0}', space=sflag, size = 0x8, scoped, tag = 'scoped memory for tpu_custom_call.1']
    %8 = vsyncpa [#allocation3], 0
    %s9 = scalar_lea.sflag [#allocation3], 1
    %10 = vsyncpa %s9, 0
    loop: start=0, step=1, limit=4
    $region2: #{tpu_custom_call.1} parent=1 // loop_pre_header
      _
    $region3: #{tpu_custom_call.1} parent=1 // loop_header
      %s12 = sphi 0, %s16
      %p13 = scmp.ge.s32.totalorder %s12, 4
      %s19 = sphi 0, %s31
      %s20 = sphi 0, %s27
      %s21 = sphi 0, %s19
      %s22 = sphi 0, %s20
      %s23 = sphi 0, %s21
      %s24 = sphi 0, %s22
      %s34 = sphi 0, %s36
      %s37 = sphi 0, %s34
      %s38 = sphi 0, %s37
      %s54 = sphi 0, %s38
      %s60 = sphi 0, %s62
      %s63 = sphi 0, %s60
      %s64 = sphi 0, %s63
      %s80 = sphi 0, %s64
      %s88 = sphi 0, %s90
      %s91 = sphi 0, %s88
      %s92 = sphi 0, %s91
      %s108 = sphi 0, %s92
      %s116 = sphi 0, %s118
      %s119 = sphi 0, %s116
      %s120 = sphi 0, %s119
      %s136 = sphi 0, %s120
    $region4: #{tpu_custom_call.1} parent=1 // loop_header_branch
      %15 = sbr.rel (%p13) target = $region8
    $region5: #{tpu_custom_call.1} parent=1 // loop_body
      %s17 = ssub.s32 %s12, 1
      %s18 = ssub.s32 %s12, 2
      %s25 = sadd.s32 1, %s20
      %p26 = scmp.ge.s32.totalorder %s25, 1
      %s27 = scalar_select %p26, 0, %s25
      %s28 = sadd.s32 1, %s19
      %s29 = scalar_select %p26, %s28, %s19
      %p30 = scmp.ge.s32.totalorder %s29, 2
      %s31 = scalar_select %p30, 0, %s29
      %s32 = ssub.s32 %s20, %s27
      %p33 = scmp.eq.s32.totalorder %s32, 0
      %s35 = sadd.s32 %s34, 1
      %s36 = scalar_select %p33, %s34, %s35
      %p39 = pneg %p33
      %p40 = scmp.eq.s32.totalorder %s12, 1
      %p41 = por %p39, %p40
      %p42 = scmp.ne.s32.totalorder %s34, %s37
      %p43 = scmp.eq.s32.totalorder %s12, 0
      %p44 = por %p42, %p43
      %p45 = scmp.ne.s32.totalorder %s34, %s37
      %p46 = scmp.eq.s32.totalorder %s17, 1
      %p47 = por %p45, %p46
      %p48 = scmp.ne.s32.totalorder %s37, %s38
      %p49 = scmp.eq.s32.totalorder %s17, 0
      %p50 = por %p48, %p49
      %p51 = scmp.ne.s32.totalorder %s37, %s38
      %p52 = scmp.eq.s32.totalorder %s18, 1
      %p53 = por %p51, %p52
      %p55 = scmp.ne.s32.totalorder %s38, %s54
      %p56 = scmp.eq.s32.totalorder %s18, 0
      %p57 = por %p55, %p56
      %s58 = ssub.s32 %s20, %s27
      %p59 = scmp.eq.s32.totalorder %s58, 0
      %s61 = sadd.s32 %s60, 1
      %s62 = scalar_select %p59, %s60, %s61
      %p65 = pneg %p59
      %p66 = scmp.eq.s32.totalorder %s12, 1
      %p67 = por %p65, %p66
      %p68 = scmp.ne.s32.totalorder %s60, %s63
      %p69 = scmp.eq.s32.totalorder %s12, 0
      %p70 = por %p68, %p69
      %p71 = scmp.ne.s32.totalorder %s60, %s63
      %p72 = scmp.eq.s32.totalorder %s17, 1
      %p73 = por %p71, %p72
      %p74 = scmp.ne.s32.totalorder %s63, %s64
      %p75 = scmp.eq.s32.totalorder %s17, 0
      %p76 = por %p74, %p75
      %p77 = scmp.ne.s32.totalorder %s63, %s64
      %p78 = scmp.eq.s32.totalorder %s18, 1
      %p79 = por %p77, %p78
      %p81 = scmp.ne.s32.totalorder %s64, %s80
      %p82 = scmp.eq.s32.totalorder %s18, 0
      %p83 = por %p81, %p82
      %s84 = ssub.s32 %s19, %s31
      %s85 = ssub.s32 %s20, %s27
      %s86 = sor.u32 %s84, %s85
      %p87 = scmp.eq.s32.totalorder %s86, 0
      %s89 = sadd.s32 %s88, 1
      %s90 = scalar_select %p87, %s88, %s89
      %p93 = pneg %p87
      %p94 = scmp.eq.s32.totalorder %s12, 1
      %p95 = por %p93, %p94
      %p96 = scmp.ne.s32.totalorder %s88, %s91
      %p97 = scmp.eq.s32.totalorder %s12, 0
      %p98 = por %p96, %p97
      %p99 = scmp.ne.s32.totalorder %s88, %s91
      %p100 = scmp.eq.s32.totalorder %s17, 1
      %p101 = por %p99, %p100
      %p102 = scmp.ne.s32.totalorder %s91, %s92
      %p103 = scmp.eq.s32.totalorder %s17, 0
      %p104 = por %p102, %p103
      %p105 = scmp.ne.s32.totalorder %s91, %s92
      %p106 = scmp.eq.s32.totalorder %s18, 1
      %p107 = por %p105, %p106
      %p109 = scmp.ne.s32.totalorder %s92, %s108
      %p110 = scmp.eq.s32.totalorder %s18, 0
      %p111 = por %p109, %p110
      %s112 = ssub.s32 %s19, %s31
      %s113 = ssub.s32 %s20, %s27
      %s114 = sor.u32 %s112, %s113
      %p115 = scmp.eq.s32.totalorder %s114, 0
      %s117 = sadd.s32 %s116, 1
      %s118 = scalar_select %p115, %s116, %s117
      %p121 = pneg %p115
      %p122 = scmp.eq.s32.totalorder %s12, 1
      %p123 = por %p121, %p122
      %p124 = scmp.ne.s32.totalorder %s116, %s119
      %p125 = scmp.eq.s32.totalorder %s12, 0
      %p126 = por %p124, %p125
      %p127 = scmp.ne.s32.totalorder %s116, %s119
      %p128 = scmp.eq.s32.totalorder %s17, 1
      %p129 = por %p127, %p128
      %p130 = scmp.ne.s32.totalorder %s119, %s120
      %p131 = scmp.eq.s32.totalorder %s17, 0
      %p132 = por %p130, %p131
      %p133 = scmp.ne.s32.totalorder %s119, %s120
      %p134 = scmp.eq.s32.totalorder %s18, 1
      %p135 = por %p133, %p134
      %p137 = scmp.ne.s32.totalorder %s120, %s136
      %p138 = scmp.eq.s32.totalorder %s18, 0
      %p139 = por %p137, %p138
      %p140 = scmp.le.s32.totalorder 1, %s12
      %p141 = scmp.lt.s32.totalorder %s12, 3
      %p142 = pnand %p140, %p141
      %p143 = pneg %p142
      // Predicated region
      $region9: #{tpu_custom_call.1} parent=5 // pred_check
        _
      $region10: #{tpu_custom_call.1} parent=5 // pred_check_branch
        %145 = sbr.rel (%p142) target = $region12
      $region11: #{tpu_custom_call.1} parent=5 // pred_region
        %s146 = ssub.s32 %s12, 1
        // Predicated region
        $region13: #{tpu_custom_call.1} parent=11 // pred_check
          %p147 = pneg %p50
        $region14: #{tpu_custom_call.1} parent=11 // pred_check_branch
          %149 = sbr.rel (%p147) target = $region16
        $region15: #{tpu_custom_call.1} parent=11 // pred_region
          %p150 = scmp.lt.s32.totalorder %s22, 0
          %s151 = scalar_select %p150, %s22, 0
          %s152 = smul.addr %s151, 4
          %s153 = scalar_lea.vmem %s0, %s152
        $region16: #{tpu_custom_call.1} parent=11 // pred_fallthru
          _
        // Predicated region
        $region17: #{tpu_custom_call.1} parent=11 // pred_check
          %p154 = pneg %p76
        $region18: #{tpu_custom_call.1} parent=11 // pred_check_branch
          %156 = sbr.rel (%p154) target = $region20
        $region19: #{tpu_custom_call.1} parent=11 // pred_region
          %p157 = scmp.lt.s32.totalorder %s22, 0
          %s158 = scalar_select %p157, %s22, 0
          %s159 = smul.addr %s158, 4
          %s160 = scalar_lea.vmem %s1, %s159
        $region20: #{tpu_custom_call.1} parent=11 // pred_fallthru
          _
      $region12: #{tpu_custom_call.1} parent=5 // pred_fallthru
        _
      %p161 = scmp.lt.s32.totalorder %s12, 2
      // Predicated region
      $region21: #{tpu_custom_call.1} parent=5 // pred_check
        %p162 = pneg %p161
      $region22: #{tpu_custom_call.1} parent=5 // pred_check_branch
        %164 = sbr.rel (%p162) target = $region24
      $region23: #{tpu_custom_call.1} parent=5 // pred_region
        // Predicated region
        $region25: #{tpu_custom_call.1} parent=23 // pred_check
          %p165 = pneg %p98
        $region26: #{tpu_custom_call.1} parent=23 // pred_check_branch
          %167 = sbr.rel (%p165) target = $region28
        $region27: #{tpu_custom_call.1} parent=23 // pred_region
          %p168 = scmp.lt.s32.totalorder %s19, 1
          %s169 = scalar_select %p168, %s19, 1
          %p170 = scmp.lt.s32.totalorder %s20, 0
          %s171 = scalar_select %p170, %s20, 0
          %s172 = smul.addr %s169, 4
          %s173 = sadd.s32 %s171, %s172
          %s174 = smul.addr %s173, 4
          %s175 = scalar_lea.vmem %s2, %s174
        $region28: #{tpu_custom_call.1} parent=23 // pred_fallthru
          _
      $region24: #{tpu_custom_call.1} parent=5 // pred_fallthru
        _
      %p176 = scmp.le.s32.totalorder 1, %s12
      %p177 = scmp.lt.s32.totalorder %s12, 3
      %p178 = pnand %p176, %p177
      %p179 = pneg %p178
      // Predicated region
      $region29: #{tpu_custom_call.1} parent=5 // pred_check
        _
      $region30: #{tpu_custom_call.1} parent=5 // pred_check_branch
        %181 = sbr.rel (%p178) target = $region32
      $region31: #{tpu_custom_call.1} parent=5 // pred_region
        %s182 = ssub.s32 %s12, 1
        %p183 = scmp.lt.s32.totalorder %s22, 0
        %s184 = scalar_select %p183, %s22, 0
        %s185 = smul.addr %s184, 4
        %s186 = scalar_lea.vmem %s0, %s185
        %p187 = pneg %p50
        %p188 = pneg %p47
        %p189 = scmp.lt.s32.totalorder %s22, 0
        %s190 = scalar_select %p189, %s22, 0
        %s191 = smul.addr %s190, 4
        %s192 = scalar_lea.vmem %s1, %s191
        %p193 = pneg %p76
        %p194 = pneg %p73
        %p195 = scmp.lt.s32.totalorder %s21, 1
        %s196 = scalar_select %p195, %s21, 1
        %p197 = scmp.lt.s32.totalorder %s22, 0
        %s198 = scalar_select %p197, %s22, 0
        %s199 = smul.addr %s196, 4
        %s200 = sadd.s32 %s198, %s199
        %s201 = smul.addr %s200, 4
        %s202 = scalar_lea.vmem %s2, %s201
        %p203 = pneg %p104
        %p204 = pneg %p101
        %p205 = pneg %p132
        %p206 = pneg %p129
        %s207 = sand.u32 %s119, 1
        %s208 = scalar_lea.sflag [#allocation3], %s207
        %s209 = sand.u32 %s119, 1
        %s210 = smul.addr %s209, 8
        %s211 = scalar_lea.vmem [#allocation2], %s210
        %p212 = scmp.lt.s32.totalorder %s22, 0
        %s213 = scalar_select %p212, %s22, 0
        %s214 = smul.addr %s213, 4
        %s215 = scalar_lea.vmem %s0, %s214
        %p216 = scmp.lt.s32.totalorder %s22, 0
        %s217 = scalar_select %p216, %s22, 0
        %s218 = smul.addr %s217, 4
        %s219 = scalar_lea.vmem %s1, %s218
        %p220 = scmp.lt.s32.totalorder %s21, 1
        %s221 = scalar_select %p220, %s21, 1
        %p222 = scmp.lt.s32.totalorder %s22, 0
        %s223 = scalar_select %p222, %s22, 0
        %s224 = smul.addr %s221, 4
        %s225 = sadd.s32 %s223, %s224
        %s226 = smul.addr %s225, 4
        %s227 = scalar_lea.vmem %s2, %s226
        %v228 = vld [vmem:[%s227] sm:$0xf]
        %v229 = vld [vmem:[%s215] sm:$0xf]
        %v230 = vld [vmem:[%s215 + $0x4] sm:$0xf]
        %232 = vset.pattern.permute.xlu0 0
        %233 = vperm.xlu0 %232, %v229
        %v234 = vpop.permute.xlu0 %233
        %237 = vset.pattern.permute.xlu0 0
        %238 = vperm.xlu0 %237, %v230
        %v239 = vpop.permute.xlu0 %238
        %v241 = vmul.f32 %v234, %v228
        %v242 = vmul.f32 %v239, %v228
        %v243 = vadd.f32 %v241, 0.0
        %v244 = vadd.f32 %v242, 0.0
        %s245 = scalar_lea.vmem %s227, 4
        %v246 = vld [vmem:[%s245] sm:$0xf]
        %s247 = scalar_lea.vmem %s215, 8
        %v248 = vld [vmem:[%s247] sm:$0xf]
        %v249 = vld [vmem:[%s247 + $0x4] sm:$0xf]
        %251 = vset.pattern.permute.xlu0 0
        %252 = vperm.xlu0 %251, %v248
        %v253 = vpop.permute.xlu0 %252
        %256 = vset.pattern.permute.xlu0 0
        %257 = vperm.xlu0 %256, %v249
        %v258 = vpop.permute.xlu0 %257
        %v260 = vmul.f32 %v253, %v246
        %v261 = vmul.f32 %v258, %v246
        %v262 = vadd.f32 %v243, %v260
        %v263 = vadd.f32 %v244, %v261
        %s264 = scalar_lea.vmem %s215, 16
        %v265 = vld [vmem:[%s264] sm:$0xf]
        %v266 = vld [vmem:[%s264 + $0x4] sm:$0xf]
        %268 = vset.pattern.permute.xlu0 0
        %269 = vperm.xlu0 %268, %v265
        %v270 = vpop.permute.xlu0 %269
        %273 = vset.pattern.permute.xlu0 0
        %274 = vperm.xlu0 %273, %v266
        %v275 = vpop.permute.xlu0 %274
        %v277 = vmul.f32 %v270, %v228
        %v278 = vmul.f32 %v275, %v228
        %281 = vrot.lane.b32.xlu0 %v277, 127
        %v282 = vpop.permute.xlu0 %281
        %283 = vrot.lane.b32.xlu0 %v278, 127
        %v284 = vpop.permute.xlu0 %283
        %v287 = vadd.f32 %v262, %v282
        %v288 = vadd.f32 %v263, %v284
        %s289 = scalar_lea.vmem %s227, 8
        %v290 = vld [vmem:[%s289] sm:$0xf]
        %s291 = scalar_lea.vmem %s215, 24
        %v292 = vld [vmem:[%s291] sm:$0xf]
        %v293 = vld [vmem:[%s291 + $0x4] sm:$0xf]
        %295 = vset.pattern.permute.xlu0 0
        %296 = vperm.xlu0 %295, %v292
        %v297 = vpop.permute.xlu0 %296
        %300 = vset.pattern.permute.xlu0 0
        %301 = vperm.xlu0 %300, %v293
        %v302 = vpop.permute.xlu0 %301
        %v304 = vmul.f32 %v297, %v290
        %v305 = vmul.f32 %v302, %v290
        %v306 = vadd.f32 %v287, %v304
        %v307 = vadd.f32 %v288, %v305
        %s308 = scalar_lea.vmem %s227, 12
        %v309 = vld [vmem:[%s308] sm:$0xf]
        %s310 = scalar_lea.vmem %s215, 32
        %v311 = vld [vmem:[%s310] sm:$0xf]
        %v312 = vld [vmem:[%s310 + $0x4] sm:$0xf]
        %314 = vset.pattern.permute.xlu0 0
        %315 = vperm.xlu0 %314, %v311
        %v316 = vpop.permute.xlu0 %315
        %319 = vset.pattern.permute.xlu0 0
        %320 = vperm.xlu0 %319, %v312
        %v321 = vpop.permute.xlu0 %320
        %v323 = vmul.f32 %v316, %v309
        %v324 = vmul.f32 %v321, %v309
        %v325 = vadd.f32 %v306, %v323
        %v326 = vadd.f32 %v307, %v324
        %s327 = scalar_lea.vmem %s215, 40
        %v328 = vld [vmem:[%s327] sm:$0xf]
        %v329 = vld [vmem:[%s327 + $0x4] sm:$0xf]
        %331 = vset.pattern.permute.xlu0 0
        %332 = vperm.xlu0 %331, %v328
        %v333 = vpop.permute.xlu0 %332
        %336 = vset.pattern.permute.xlu0 0
        %337 = vperm.xlu0 %336, %v329
        %v338 = vpop.permute.xlu0 %337
        %v340 = vmul.f32 %v333, %v290
        %v341 = vmul.f32 %v338, %v290
        %344 = vrot.lane.b32.xlu0 %v340, 127
        %v345 = vpop.permute.xlu0 %344
        %346 = vrot.lane.b32.xlu0 %v341, 127
        %v347 = vpop.permute.xlu0 %346
        %v350 = vadd.f32 %v325, %v345
        %v351 = vadd.f32 %v326, %v347
        %s352 = scalar_lea.vmem %s215, 48
        %v353 = vld [vmem:[%s352] sm:$0xf]
        %v354 = vld [vmem:[%s352 + $0x4] sm:$0xf]
        %356 = vset.pattern.permute.xlu0 0
        %357 = vperm.xlu0 %356, %v353
        %v358 = vpop.permute.xlu0 %357
        %361 = vset.pattern.permute.xlu0 0
        %362 = vperm.xlu0 %361, %v354
        %v363 = vpop.permute.xlu0 %362
        %v365 = vmul.f32 %v358, %v228
        %v366 = vmul.f32 %v363, %v228
        %369 = vrot.lane.b32.xlu0 %v365, 120
        %v370 = vpop.permute.xlu0 %369
        %371 = vrot.lane.b32.xlu0 %v366, 120
        %v372 = vpop.permute.xlu0 %371
        %v375 = vadd.f32 %v350, %v370
        %v376 = vadd.f32 %v351, %v372
        %s377 = scalar_lea.vmem %s215, 56
        %v378 = vld [vmem:[%s377] sm:$0xf]
        %v379 = vld [vmem:[%s377 + $0x4] sm:$0xf]
        %381 = vset.pattern.permute.xlu0 0
        %382 = vperm.xlu0 %381, %v378
        %v383 = vpop.permute.xlu0 %382
        %386 = vset.pattern.permute.xlu0 0
        %387 = vperm.xlu0 %386, %v379
        %v388 = vpop.permute.xlu0 %387
        %v390 = vmul.f32 %v383, %v246
        %v391 = vmul.f32 %v388, %v246
        %394 = vrot.lane.b32.xlu0 %v390, 120
        %v395 = vpop.permute.xlu0 %394
        %396 = vrot.lane.b32.xlu0 %v391, 120
        %v397 = vpop.permute.xlu0 %396
        %v400 = vadd.f32 %v375, %v395
        %v401 = vadd.f32 %v376, %v397
        %s402 = scalar_lea.vmem %s215, 64
        %v403 = vld [vmem:[%s402] sm:$0xf]
        %v404 = vld [vmem:[%s402 + $0x4] sm:$0xf]
        %406 = vset.pattern.permute.xlu0 0
        %407 = vperm.xlu0 %406, %v403
        %v408 = vpop.permute.xlu0 %407
        %411 = vset.pattern.permute.xlu0 0
        %412 = vperm.xlu0 %411, %v404
        %v413 = vpop.permute.xlu0 %412
        %v415 = vmul.f32 %v408, %v228
        %v416 = vmul.f32 %v413, %v228
        %419 = vrot.lane.b32.xlu0 %v415, 119
        %v420 = vpop.permute.xlu0 %419
        %421 = vrot.lane.b32.xlu0 %v416, 119
        %v422 = vpop.permute.xlu0 %421
        %v425 = vadd.f32 %v400, %v420
        %v426 = vadd.f32 %v401, %v422
        %v427 = vld [vmem:[%s219] sm:$0xf]
        %v428 = vld [vmem:[%s219 + $0x4] sm:$0xf]
        %430 = vset.pattern.permute.xlu0 0
        %431 = vperm.xlu0 %430, %v427
        %v432 = vpop.permute.xlu0 %431
        %435 = vset.pattern.permute.xlu0 0
        %436 = vperm.xlu0 %435, %v428
        %v437 = vpop.permute.xlu0 %436
        %v439 = vadd.f32 %v425, %v432
        %v440 = vadd.f32 %v426, %v437
        %vm441 = vcmask 453632
        %442 = vst.msk [vmem:[%s211] sm:$0xf] %vm441, %v439
        %443 = vst.msk [vmem:[%s211 + $0x4] sm:$0xf] %vm441, %v440
        %s444 = sand.u32 %s119, 1
        %s445 = scalar_lea.sflag [#allocation3], %s444
        %s446 = sand.u32 %s119, 1
        %s447 = smul.addr %s446, 8
        %s448 = scalar_lea.vmem [#allocation2], %s447
        // Predicated region
        $region33: #{tpu_custom_call.1} parent=31 // pred_check
          %p449 = pneg %p129
        $region34: #{tpu_custom_call.1} parent=31 // pred_check_branch
          %451 = sbr.rel (%p449) target = $region36
        $region35: #{tpu_custom_call.1} parent=31 // pred_region
          %s453 = ssub.s32 128, 128
          %454 = vsyncadd %s445, %s453
          %s455 = smul.addr %s21, 2
          %s456 = sadd.s32 %s22, %s455
          %s457 = smul.addr %s456, 64
          %s458 = scalar_lea.hbm %s3, %s457
          %s459 = sshll.u32 %s448, 4
          %s460 = int_to_ptr.vmem [resolvable:$true] %s459
          %465 = dma.vmem_to_hbm [thread:$0]  %s460, 128, %s458, %s445, 64, 64, 4
        $region36: #{tpu_custom_call.1} parent=31 // pred_fallthru
          _
      $region32: #{tpu_custom_call.1} parent=5 // pred_fallthru
        _
      %p466 = scmp.le.s32.totalorder 2, %s12
      // Predicated region
      $region37: #{tpu_custom_call.1} parent=5 // pred_check
        %p467 = pneg %p466
      $region38: #{tpu_custom_call.1} parent=5 // pred_check_branch
        %469 = sbr.rel (%p467) target = $region40
      $region39: #{tpu_custom_call.1} parent=5 // pred_region
        %s470 = ssub.s32 %s12, 2
        // Predicated region
        $region41: #{tpu_custom_call.1} parent=39 // pred_check
          %p471 = pneg %p135
        $region42: #{tpu_custom_call.1} parent=39 // pred_check_branch
          %473 = sbr.rel (%p471) target = $region44
        $region43: #{tpu_custom_call.1} parent=39 // pred_region
          %s474 = sand.u32 %s120, 1
          %s475 = scalar_lea.sflag [#allocation3], %s474
          %s476 = sand.u32 %s120, 1
          %s477 = smul.addr %s476, 8
          %s478 = scalar_lea.vmem [#allocation2], %s477
          %479 = dma.done %s475, 128
        $region44: #{tpu_custom_call.1} parent=39 // pred_fallthru
          _
      $region40: #{tpu_custom_call.1} parent=5 // pred_fallthru
        _
    $region6: #{tpu_custom_call.1} parent=1 // loop_footer
      %s16 = sadd.s32 1, %s12
    $region7: #{tpu_custom_call.1} parent=1 // loop_footer_branch
      %11 = sbr.rel target = $region3
    $region8: #{tpu_custom_call.1} parent=1 // loop_exit
      _
    %480 = vsyncpa [#allocation3], 1
    %s481 = scalar_lea.sflag [#allocation3], 1
    %482 = vsyncpa %s481, 1

</llo_original>
